<compile_context>
chip_gen: v7x
topology: tpu7x:2x2x1
jax: 0.10.0
libtpu: 0.0.40
codegen_flags: <defaults>
</compile_context>

<pallas_src>
import jax
import jax.numpy as jnp
from jax.experimental import pallas as pl
from jax.experimental.pallas import tpu as pltpu

# Rectangle bounds (module-level globals referenced by the PyTorch file).
X_MIN, X_MAX = 0.0, 4.0
Y_MIN, Y_MAX = 1.0, 3.0

LANES = 128            # vreg lane width
SUBLANES = 8           # f32 sublane granule
MAX_BLOCK_ROWS = 8192  # (8192, 128) f32 output block = 4 MiB per buffer


def _round_up(v, m):
    return ((v + m - 1) // m) * m


def _rectangle_kernel(x_ref, o_ref):
    # x_ref: (2, block_rows, 128) f32 -- x-coords stacked over y-coords.
    # o_ref: (block_rows, 128) f32 lane-dense output slab.
    x0 = x_ref[0]
    x1 = x_ref[1]
    # sigmoid(a)*sigmoid(b)*sigmoid(c)*sigmoid(d)
    #   = 1 / ((1 + e^-a)(1 + e^-b)(1 + e^-c)(1 + e^-d))
    # Signs folded into the constants: each factor is one VPU sub + one EUP exp.
    e1 = jnp.exp(X_MIN - x0)
    e2 = jnp.exp(x0 - X_MAX)
    e3 = jnp.exp(Y_MIN - x1)
    e4 = jnp.exp(x1 - Y_MAX)
    denom = ((1.0 + e1) * (1.0 + e2)) * ((1.0 + e3) * (1.0 + e4))
    # Exact reciprocal (approx EUP recip could miss the 1e-5 tolerance).
    o_ref[...] = 1.0 / denom


@jax.jit
def simple_rectangle_nn(x):
    """x: (N, 2) float32 -> (N, 1) float32 (matches SimpleRectangleNN.forward)."""
    x = x.astype(jnp.float32)
    n = x.shape[0]

    # Lane-dense repack: N points -> rows of 128 lanes; pad rows only to the
    # sublane granule (8), NOT to a block multiple.
    rows = pl.cdiv(n, LANES)
    rows_p = _round_up(rows, SUBLANES)
    n_p = rows_p * LANES
    pad = n_p - n

    # Single stacked input (2, rows_p, 128): one DMA stream per grid step.
    # Under jit the pad + transpose + reshape fuse into a single repack fusion.
    x_pad = jnp.pad(x, ((0, pad), (0, 0)))            # (n_p, 2)
    x_stacked = x_pad.T.reshape(2, rows_p, LANES)     # (2, rows_p, 128)

    # Block sizing: as big as possible (amortize per-step overhead) while keeping
    # >= ~4 grid steps when there is enough data (v7x megacore sharding).
    block_rows = min(
        MAX_BLOCK_ROWS,
        max(SUBLANES, _round_up(pl.cdiv(rows_p, 4), SUBLANES)),
    )
    grid = (pl.cdiv(rows_p, block_rows),)   # ragged last block is masked by Pallas

    out_slab = pl.pallas_call(
        _rectangle_kernel,
        out_shape=jax.ShapeDtypeStruct((rows_p, LANES), jnp.float32),
        grid=grid,
        in_specs=[
            pl.BlockSpec((2, block_rows, LANES), lambda i: (0, i, 0)),
        ],
        out_specs=pl.BlockSpec((block_rows, LANES), lambda i: (i, 0)),
        compiler_params=pltpu.CompilerParams(
            dimension_semantics=("parallel",),
            vmem_limit_bytes=40 * 1024 * 1024,
        ),
    )(x_stacked)

    # Back to the PyTorch output shape; slice/reshape fuse into the jit program.
    return out_slab.reshape(n_p)[:n].reshape(n, 1)


if __name__ == "__main__":
    key = jax.random.PRNGKey(0)
    # Small batch of 2-D points, some inside and some outside the rectangle.
    x = jax.random.uniform(key, (8, 2), dtype=jnp.float32, minval=-2.0, maxval=6.0)

    out = simple_rectangle_nn(x)
    out = jax.block_until_ready(out)

    # Pure-JAX reference of the same forward pass (4x Linear(2,1) + sigmoid, product).
    w_ref = jnp.array([[1.0, -1.0, 0.0, 0.0],
                       [0.0, 0.0, 1.0, -1.0]], dtype=jnp.float32)
    b_ref = jnp.array([[-X_MIN, X_MAX, -Y_MIN, Y_MAX]], dtype=jnp.float32)
    s = jax.nn.sigmoid(x @ w_ref + b_ref)
    ref = jnp.prod(s, axis=1, keepdims=True)

    assert out.shape == (8, 1)
    assert jnp.allclose(out, ref, atol=1e-5, rtol=1e-5)

    print("KERNEL_OK")
</pallas_src>

<mosaic_0001>
module attributes {stable_mosaic.version = 11 : i64} {
  func.func @_rectangle_kernel(%arg0: i32, %arg1: memref<2x8x128xf32, #tpu.memory_space<vmem>>, %arg2: memref<8x128xf32, #tpu.memory_space<vmem>>) attributes {dimension_semantics = [#tpu.dimension_semantics<parallel>], iteration_bounds = array<i64: 1>, scalar_prefetch = 0 : i64, scratch_operands = 0 : i64, tpu.core_type = #tpu.core_type<tc>, window_params = [{transform_indices = @transform_0, window_bounds = array<i64: 2, 8, 128>}, {transform_indices = @transform_1, window_bounds = array<i64: 8, 128>}]} {
    %c0 = arith.constant 0 : index
    %c0_0 = arith.constant 0 : index
    %c0_1 = arith.constant 0 : index
    %0 = vector.load %arg1[%c0, %c0_0, %c0_1] : memref<2x8x128xf32, #tpu.memory_space<vmem>>, vector<1x8x128xf32>
    %1 = vector.shape_cast %0 : vector<1x8x128xf32> to vector<8x128xf32>
    %c1 = arith.constant 1 : index
    %c0_2 = arith.constant 0 : index
    %c0_3 = arith.constant 0 : index
    %2 = vector.load %arg1[%c1, %c0_2, %c0_3] : memref<2x8x128xf32, #tpu.memory_space<vmem>>, vector<1x8x128xf32>
    %3 = vector.shape_cast %2 : vector<1x8x128xf32> to vector<8x128xf32>
    %cst = arith.constant 0.000000e+00 : f32
    %4 = vector.broadcast %cst : f32 to vector<8x128xf32>
    %5 = arith.subf %4, %1 : vector<8x128xf32>
    %6 = math.exp %5 : vector<8x128xf32>
    %cst_4 = arith.constant 4.000000e+00 : f32
    %7 = vector.broadcast %cst_4 : f32 to vector<8x128xf32>
    %8 = arith.subf %1, %7 : vector<8x128xf32>
    %9 = math.exp %8 : vector<8x128xf32>
    %cst_5 = arith.constant 1.000000e+00 : f32
    %10 = vector.broadcast %cst_5 : f32 to vector<8x128xf32>
    %11 = arith.subf %10, %3 : vector<8x128xf32>
    %12 = math.exp %11 : vector<8x128xf32>
    %cst_6 = arith.constant 3.000000e+00 : f32
    %13 = vector.broadcast %cst_6 : f32 to vector<8x128xf32>
    %14 = arith.subf %3, %13 : vector<8x128xf32>
    %15 = math.exp %14 : vector<8x128xf32>
    %cst_7 = arith.constant 1.000000e+00 : f32
    %16 = vector.broadcast %cst_7 : f32 to vector<8x128xf32>
    %17 = arith.addf %16, %6 : vector<8x128xf32>
    %cst_8 = arith.constant 1.000000e+00 : f32
    %18 = vector.broadcast %cst_8 : f32 to vector<8x128xf32>
    %19 = arith.addf %18, %9 : vector<8x128xf32>
    %20 = arith.mulf %17, %19 : vector<8x128xf32>
    %cst_9 = arith.constant 1.000000e+00 : f32
    %21 = vector.broadcast %cst_9 : f32 to vector<8x128xf32>
    %22 = arith.addf %21, %12 : vector<8x128xf32>
    %cst_10 = arith.constant 1.000000e+00 : f32
    %23 = vector.broadcast %cst_10 : f32 to vector<8x128xf32>
    %24 = arith.addf %23, %15 : vector<8x128xf32>
    %25 = arith.mulf %22, %24 : vector<8x128xf32>
    %26 = arith.mulf %20, %25 : vector<8x128xf32>
    %cst_11 = arith.constant 1.000000e+00 : f32
    %27 = vector.broadcast %cst_11 : f32 to vector<8x128xf32>
    %28 = arith.divf %27, %26 : vector<8x128xf32>
    %c0_12 = arith.constant 0 : index
    %c0_13 = arith.constant 0 : index
    %29 = vector.load %arg2[%c0_12, %c0_13] : memref<8x128xf32, #tpu.memory_space<vmem>>, vector<8x128xf32>
    tpu.vector_store %arg2[%c0_12, %c0_13], %28 {strides = array<i32>} : memref<8x128xf32, #tpu.memory_space<vmem>>, vector<8x128xf32>,
    return
  }
  func.func @transform_0(%arg0: i32) -> (i32, i32, i32) {
    %c0_i32 = arith.constant 0 : i32
    %c0_i32_0 = arith.constant 0 : i32
    %c0_i32_1 = arith.constant 0 : i32
    return %c0_i32, %arg0, %c0_i32_0 : i32, i32, i32
  }
  func.func @transform_1(%arg0: i32) -> (i32, i32) {
    %c0_i32 = arith.constant 0 : i32
    %c0_i32_0 = arith.constant 0 : i32
    return %arg0, %c0_i32 : i32, i32
  }
}

</mosaic_0001>

<llo_original>
// kernel: simple_rectangle_nn.1
$region0: #{simple_rectangle_nn.1}
  #allocation0 [shape = 'u32[]', space=smem, size = 0x4, offset = 0x4, fixed_abs, tag = 'smem constant byte address 0x4 - core index']
  #allocation1 [shape = 'u32[144,128]{1,0:T(1,128)}', space=vmem, size = 0x12000, scoped, tag = 'internal scratch']
  %s0 = inlined_call_operand.vmem [shape: f32[2,8,128], index: 0, kind: input, shape index: {}]
  %s1 = inlined_call_operand.vmem [shape: f32[8,128], index: 1, kind: output, shape index: {}]
  %s2 = sld [smem:[#allocation0]]
  $region14: #{simple_rectangle_nn.1} parent=0
    _
  %s4 = ssub.s32 1, %s2
  %s5 = scalar_select 0, %s4, %s2
  // Predicated region
  $region2: #{simple_rectangle_nn.1} parent=0 // pred_check
    _
  $region3: #{simple_rectangle_nn.1} parent=0 // pred_check_branch
    %7 = sbr.rel (0) target = $region5
  $region4: #{simple_rectangle_nn.1} parent=0 // pred_region
    _
  $region5: #{simple_rectangle_nn.1} parent=0 // pred_fallthru
    _
  %v8 = vld [vmem:[%s0] sm:$0xff]
  %s9 = scalar_lea.vmem %s0, 8
  %v10 = vld [vmem:[%s9] sm:$0xff]
  %v11 = vsub.f32 0.0, %v8
  %v12 = vmul.f32 %v11, 1.442695
  %v13 = vpow.pop %v12
  %v14 = vsub.f32 %v8, 4.0
  %v15 = vmul.f32 %v14, 1.442695
  %v16 = vpow.pop %v15
  %v17 = vsub.f32 1.0, %v10
  %v18 = vmul.f32 %v17, 1.442695
  %v19 = vpow.pop %v18
  %v20 = vsub.f32 %v10, 3.0
  %v21 = vmul.f32 %v20, 1.442695
  %v22 = vpow.pop %v21
  %v23 = vadd.f32 %v13, 1.0
  %v24 = vadd.f32 %v16, 1.0
  %v25 = vmul.f32 %v23, %v24
  %v26 = vadd.f32 %v19, 1.0
  %v27 = vadd.f32 %v22, 1.0
  %v28 = vmul.f32 %v26, %v27
  %v29 = vmul.f32 %v25, %v28
  %v30 = vrcp.pop %v29
  %v31 = vmul.f32 1.0, %v30
  %32 = vst [vmem:[%s1] sm:$0xff] %v31
  // Predicated region
  $region6: #{simple_rectangle_nn.1} parent=0 // pred_check
    _
  $region7: #{simple_rectangle_nn.1} parent=0 // pred_check_branch
    %34 = sbr.rel (0) target = $region9
  $region8: #{simple_rectangle_nn.1} parent=0 // pred_region
    _
  $region9: #{simple_rectangle_nn.1} parent=0 // pred_fallthru
    _
  // Predicated region
  $region10: #{simple_rectangle_nn.1} parent=0 // pred_check
    _
  $region11: #{simple_rectangle_nn.1} parent=0 // pred_check_branch
    %36 = sbr.rel (0) target = $region13
  $region12: #{simple_rectangle_nn.1} parent=0 // pred_region
    _
  $region13: #{simple_rectangle_nn.1} parent=0 // pred_fallthru
    _

</llo_original>
